<compile_context>
chip_gen: v7x
topology: tpu7x:2x2x1
jax: 0.10.0
libtpu: 0.0.40
codegen_flags: <defaults>
</compile_context>

<pallas_src>
import jax
import jax.numpy as jnp
from jax.experimental import pallas as pl
from jax.experimental.pallas import tpu as pltpu


# --------------------------------------------------------------------------- #
# Kernel (feature-major: activations are (features, TILE_B))
# --------------------------------------------------------------------------- #
def graphrec_kernel(x_ref, w1_ref, b1_ref, w2_ref, b2_ref,
                    wuv1_ref, buv1_ref, wuv2_ref, buv2_ref,
                    wuv3_ref, buv3_ref, out_ref):
    f32 = jnp.float32
    x = x_ref[...]                                            # (2D, TB) = [eu ; ev]

    # Layer 1 of both branches (w_ur1 | w_vr1) as one block-diagonal matmul.
    # BN1 / BN2 affines already folded into w1 / b1.
    h = jnp.dot(w1_ref[...], x, preferred_element_type=f32) + b1_ref[...]
    h = jnp.maximum(h, 0.0)                                   # relu(bn1(.)) ; relu(bn2(.))
    # dropout = identity (eval mode)

    # Layer 2 of both branches (w_ur2 | w_vr2), block-diagonal.
    h = jnp.dot(w2_ref[...], h, preferred_element_type=f32) + b2_ref[...]   # [x_u ; x_v]

    # w_uv1 on the concatenation (already the sublane layout of h), BN3 folded.
    h = jnp.dot(wuv1_ref[...], h, preferred_element_type=f32) + buv1_ref[...]
    h = jnp.maximum(h, 0.0)

    # w_uv2 with BN4 folded in.
    h = jnp.dot(wuv2_ref[...], h, preferred_element_type=f32) + buv2_ref[...]
    h = jnp.maximum(h, 0.0)                                   # (16, TB)

    # Final 16 -> 1 projection: VPU broadcast-multiply + XLU sublane reduce.
    # Result (1, TB) is a lane-dense output slab -> unmasked stores.
    out_ref[...] = (jnp.sum(h * wuv3_ref[...], axis=0, keepdims=True)
                    + buv3_ref[...])


# --------------------------------------------------------------------------- #
# Parameter construction (matches the PyTorch module's layers)
# --------------------------------------------------------------------------- #
def _bn_fold(gamma, beta, mean, var, eps=1e-5):
    scale = gamma / jnp.sqrt(var + eps)
    shift = beta - mean * scale
    return scale[None, :], shift[None, :]


def init_params(key, num_users, num_items, embed_dim):
    ks = list(jax.random.split(key, 32))
    k = iter(ks)
    D = embed_dim

    def lin(kw, kb, fan_in, fan_out):
        bound = 1.0 / jnp.sqrt(jnp.float32(fan_in))
        w = jax.random.uniform(kw, (fan_in, fan_out), jnp.float32, -bound, bound)
        b = jax.random.uniform(kb, (1, fan_out), jnp.float32, -bound, bound)
        return w, b

    p = {}
    p["user_emb"] = jax.random.normal(next(k), (num_users, D), jnp.float32) * 0.1
    p["item_emb"] = jax.random.normal(next(k), (num_items, D), jnp.float32) * 0.1
    p["w_ur1"], p["b_ur1"] = lin(next(k), next(k), D, D)
    p["w_ur2"], p["b_ur2"] = lin(next(k), next(k), D, D)
    p["w_vr1"], p["b_vr1"] = lin(next(k), next(k), D, D)
    p["w_vr2"], p["b_vr2"] = lin(next(k), next(k), D, D)
    w_uv1, p["b_uv1"] = lin(next(k), next(k), 2 * D, D)
    p["w_uv1_u"], p["w_uv1_v"] = w_uv1[:D], w_uv1[D:]
    p["w_uv2"], p["b_uv2"] = lin(next(k), next(k), D, 16)
    p["w_uv3"], p["b_uv3"] = lin(next(k), next(k), 16, 1)

    def bn(kg, kb, km, kv, n):
        gamma = jax.random.uniform(kg, (n,), jnp.float32, 0.5, 1.5)
        beta = jax.random.normal(kb, (n,), jnp.float32) * 0.1
        mean = jax.random.normal(km, (n,), jnp.float32) * 0.1
        var = jax.random.uniform(kv, (n,), jnp.float32, 0.5, 1.5)
        return _bn_fold(gamma, beta, mean, var)

    p["bn1_s"], p["bn1_b"] = bn(next(k), next(k), next(k), next(k), D)
    p["bn2_s"], p["bn2_b"] = bn(next(k), next(k), next(k), next(k), D)
    p["bn3_s"], p["bn3_b"] = bn(next(k), next(k), next(k), next(k), D)
    p["bn4_s"], p["bn4_b"] = bn(next(k), next(k), next(k), next(k), 16)
    return p


def prepare_inference_params(p):
    """Fold BN affines into the Linear weights, fuse the two branches into
    block-diagonal weights, and transpose everything for the feature-major
    (batch-on-lane) kernel layout.  Done once, outside the kernel."""
    D = p["w_ur1"].shape[0]

    # Layer 1 (+ BN1 / BN2 folded) -- row form first.
    w1_u = p["w_ur1"] * p["bn1_s"]
    b1_u = p["b_ur1"] * p["bn1_s"] + p["bn1_b"]
    w1_v = p["w_vr1"] * p["bn2_s"]
    b1_v = p["b_vr1"] * p["bn2_s"] + p["bn2_b"]
    w1 = jnp.zeros((2 * D, 2 * D), jnp.float32)
    w1 = w1.at[:D, :D].set(w1_u).at[D:, D:].set(w1_v)
    b1 = jnp.concatenate([b1_u, b1_v], axis=1)

    # Layer 2 (no BN).
    w2 = jnp.zeros((2 * D, 2 * D), jnp.float32)
    w2 = w2.at[:D, :D].set(p["w_ur2"]).at[D:, D:].set(p["w_vr2"])
    b2 = jnp.concatenate([p["b_ur2"], p["b_vr2"]], axis=1)

    # w_uv1 on concat (+ BN3 folded).
    wuv1 = jnp.concatenate([p["w_uv1_u"], p["w_uv1_v"]], axis=0) * p["bn3_s"]
    buv1 = p["b_uv1"] * p["bn3_s"] + p["bn3_b"]

    # w_uv2 (+ BN4 folded).
    wuv2 = p["w_uv2"] * p["bn4_s"]
    buv2 = p["b_uv2"] * p["bn4_s"] + p["bn4_b"]

    return dict(
        # pre-transposed embedding tables: gather yields feature-major input
        user_emb_T=p["user_emb"].T,            # (D, num_users)
        item_emb_T=p["item_emb"].T,            # (D, num_items)
        w1=w1.T, b1=b1.T,                      # (2D, 2D), (2D, 1)
        w2=w2.T, b2=b2.T,                      # (2D, 2D), (2D, 1)
        wuv1=wuv1.T, buv1=buv1.T,              # (D, 2D),  (D, 1)
        wuv2=wuv2.T, buv2=buv2.T,              # (16, D),  (16, 1)
        wuv3=p["w_uv3"], buv3=p["b_uv3"],      # (16, 1),  (1, 1)
    )


# --------------------------------------------------------------------------- #
# Forward wrapper
# --------------------------------------------------------------------------- #
def graphrec_forward(nodes_u, nodes_v, fp, tile_b=2048):
    B = nodes_u.shape[0]

    # Batch tiling: single full-width block for small B, 128-aligned tiles
    # (lane-dense) otherwise.
    if B <= tile_b:
        tb, n_tiles, Bp = B, 1, B
    else:
        tb = tile_b
        n_tiles = pl.cdiv(B, tb)
        Bp = n_tiles * tb

    if Bp != B:
        pad = Bp - B
        nodes_u = jnp.concatenate([nodes_u, jnp.zeros((pad,), nodes_u.dtype)])
        nodes_v = jnp.concatenate([nodes_v, jnp.zeros((pad,), nodes_v.dtype)])

    # TODO(synk): enc_u / enc_v_history are modeled as embedding lookups; the
    # gather + stack stays in plain JAX (XLA fuses it with the kernel input copy).
    euT = jnp.take(fp["user_emb_T"], nodes_u, axis=1)         # (D, Bp)
    evT = jnp.take(fp["item_emb_T"], nodes_v, axis=1)         # (D, Bp)
    xT = jnp.concatenate([euT, evT], axis=0)                  # (2D, Bp), feature-major
    two_d = xT.shape[0]

    col_map = lambda i: (0, i)                                # batch-tiled (lane axis)
    const_map = lambda i: (0, 0)                              # VMEM-resident weights

    weights = (fp["w1"], fp["b1"], fp["w2"], fp["b2"],
               fp["wuv1"], fp["buv1"], fp["wuv2"], fp["buv2"],
               fp["wuv3"], fp["buv3"])
    w_specs = [pl.BlockSpec(w.shape, const_map) for w in weights]

    out = pl.pallas_call(
        graphrec_kernel,
        out_shape=jax.ShapeDtypeStruct((1, Bp), jnp.float32),
        grid=(n_tiles,),
        in_specs=[pl.BlockSpec((two_d, tb), col_map)] + w_specs,
        out_specs=pl.BlockSpec((1, tb), col_map),
        compiler_params=pltpu.CompilerParams(
            dimension_semantics=("parallel",)),               # shards batch across TCs on v7x
    )(xT, *weights)
    return out[0, :B]                                         # scores.squeeze()


# --------------------------------------------------------------------------- #
# Pure-JAX reference (unfused / unfolded) for correctness checking
# --------------------------------------------------------------------------- #
def graphrec_reference(nodes_u, nodes_v, p):
    eu = jnp.take(p["user_emb"], nodes_u, axis=0)
    ev = jnp.take(p["item_emb"], nodes_v, axis=0)
    x_u = jnp.maximum((eu @ p["w_ur1"] + p["b_ur1"]) * p["bn1_s"] + p["bn1_b"], 0.0)
    x_u = x_u @ p["w_ur2"] + p["b_ur2"]
    x_v = jnp.maximum((ev @ p["w_vr1"] + p["b_vr1"]) * p["bn2_s"] + p["bn2_b"], 0.0)
    x_v = x_v @ p["w_vr2"] + p["b_vr2"]
    x = x_u @ p["w_uv1_u"] + x_v @ p["w_uv1_v"] + p["b_uv1"]
    x = jnp.maximum(x * p["bn3_s"] + p["bn3_b"], 0.0)
    x = jnp.maximum((x @ p["w_uv2"] + p["b_uv2"]) * p["bn4_s"] + p["bn4_b"], 0.0)
    return (x @ p["w_uv3"] + p["b_uv3"])[:, 0]


if __name__ == "__main__":
    key = jax.random.PRNGKey(0)
    k_param, k_u, k_v = jax.random.split(key, 3)

    NUM_USERS, NUM_ITEMS, EMBED_DIM, BATCH = 64, 64, 32, 8
    params = init_params(k_param, NUM_USERS, NUM_ITEMS, EMBED_DIM)
    fparams = prepare_inference_params(params)

    nodes_u = jax.random.randint(k_u, (BATCH,), 0, NUM_USERS, dtype=jnp.int32)
    nodes_v = jax.random.randint(k_v, (BATCH,), 0, NUM_ITEMS, dtype=jnp.int32)

    scores = jax.jit(graphrec_forward)(nodes_u, nodes_v, fparams)
    jax.block_until_ready(scores)

    ref = graphrec_reference(nodes_u, nodes_v, params)
    assert scores.shape == (BATCH,)
    assert jnp.allclose(scores, ref, atol=5e-4, rtol=5e-4), (scores, ref)

    print("KERNEL_OK")
</pallas_src>

<mosaic_0001>
module attributes {stable_mosaic.version = 11 : i64} {
  func.func @graphrec_kernel(%arg0: i32, %arg1: memref<64x8xf32, #tpu.memory_space<vmem>>, %arg2: memref<64x64xf32, #tpu.memory_space<vmem>>, %arg3: memref<64x1xf32, #tpu.memory_space<vmem>>, %arg4: memref<64x64xf32, #tpu.memory_space<vmem>>, %arg5: memref<64x1xf32, #tpu.memory_space<vmem>>, %arg6: memref<32x64xf32, #tpu.memory_space<vmem>>, %arg7: memref<32x1xf32, #tpu.memory_space<vmem>>, %arg8: memref<16x32xf32, #tpu.memory_space<vmem>>, %arg9: memref<16x1xf32, #tpu.memory_space<vmem>>, %arg10: memref<16x1xf32, #tpu.memory_space<vmem>>, %arg11: memref<1x1xf32, #tpu.memory_space<vmem>>, %arg12: memref<1x8xf32, #tpu.memory_space<vmem>>) attributes {dimension_semantics = [#tpu.dimension_semantics<parallel>], iteration_bounds = array<i64: 1>, scalar_prefetch = 0 : i64, scratch_operands = 0 : i64, tpu.core_type = #tpu.core_type<tc>, window_params = [{transform_indices = @transform_0, window_bounds = array<i64: 64, 8>}, {pipeline_mode = #tpu.pipeline_mode<synchronous>, transform_indices = @transform_1, window_bounds = array<i64: 64, 64>}, {pipeline_mode = #tpu.pipeline_mode<synchronous>, transform_indices = @transform_2, window_bounds = array<i64: 64, 1>}, {pipeline_mode = #tpu.pipeline_mode<synchronous>, transform_indices = @transform_3, window_bounds = array<i64: 64, 64>}, {pipeline_mode = #tpu.pipeline_mode<synchronous>, transform_indices = @transform_4, window_bounds = array<i64: 64, 1>}, {pipeline_mode = #tpu.pipeline_mode<synchronous>, transform_indices = @transform_5, window_bounds = array<i64: 32, 64>}, {pipeline_mode = #tpu.pipeline_mode<synchronous>, transform_indices = @transform_6, window_bounds = array<i64: 32, 1>}, {pipeline_mode = #tpu.pipeline_mode<synchronous>, transform_indices = @transform_7, window_bounds = array<i64: 16, 32>}, {pipeline_mode = #tpu.pipeline_mode<synchronous>, transform_indices = @transform_8, window_bounds = array<i64: 16, 1>}, {pipeline_mode = #tpu.pipeline_mode<synchronous>, transform_indices = @transform_9, window_bounds = array<i64: 16, 1>}, {pipeline_mode = #tpu.pipeline_mode<synchronous>, transform_indices = @transform_10, window_bounds = array<i64: 1, 1>}, {transform_indices = @transform_11, window_bounds = array<i64: 1, 8>}]} {
    %c0 = arith.constant 0 : index
    %c0_0 = arith.constant 0 : index
    %0 = vector.load %arg1[%c0, %c0_0] : memref<64x8xf32, #tpu.memory_space<vmem>>, vector<64x8xf32>
    %c0_1 = arith.constant 0 : index
    %c0_2 = arith.constant 0 : index
    %1 = vector.load %arg2[%c0_1, %c0_2] : memref<64x64xf32, #tpu.memory_space<vmem>>, vector<64x64xf32>
    %cst = arith.constant dense<0.000000e+00> : vector<64x8xf32>
    %2 = tpu.matmul %1, %0, %cst {dimension_numbers = #tpu.dot_dimension_numbers<[1], [0], [0], [1], [0, 0, 1, 1], [], []>} : vector<64x64xf32>, vector<64x8xf32>, vector<64x8xf32> -> vector<64x8xf32>
    %c0_3 = arith.constant 0 : index
    %c0_4 = arith.constant 0 : index
    %3 = vector.load %arg3[%c0_3, %c0_4] : memref<64x1xf32, #tpu.memory_space<vmem>>, vector<64x1xf32>
    %4 = vector.broadcast %3 : vector<64x1xf32> to vector<64x8xf32>
    %5 = arith.addf %2, %4 : vector<64x8xf32>
    %cst_5 = arith.constant 0.000000e+00 : f32
    %6 = vector.broadcast %cst_5 : f32 to vector<64x8xf32>
    %7 = arith.maximumf %5, %6 : vector<64x8xf32>
    %c0_6 = arith.constant 0 : index
    %c0_7 = arith.constant 0 : index
    %8 = vector.load %arg4[%c0_6, %c0_7] : memref<64x64xf32, #tpu.memory_space<vmem>>, vector<64x64xf32>
    %cst_8 = arith.constant dense<0.000000e+00> : vector<64x8xf32>
    %9 = tpu.matmul %8, %7, %cst_8 {dimension_numbers = #tpu.dot_dimension_numbers<[1], [0], [0], [1], [0, 0, 1, 1], [], []>} : vector<64x64xf32>, vector<64x8xf32>, vector<64x8xf32> -> vector<64x8xf32>
    %c0_9 = arith.constant 0 : index
    %c0_10 = arith.constant 0 : index
    %10 = vector.load %arg5[%c0_9, %c0_10] : memref<64x1xf32, #tpu.memory_space<vmem>>, vector<64x1xf32>
    %11 = vector.broadcast %10 : vector<64x1xf32> to vector<64x8xf32>
    %12 = arith.addf %9, %11 : vector<64x8xf32>
    %c0_11 = arith.constant 0 : index
    %c0_12 = arith.constant 0 : index
    %13 = vector.load %arg6[%c0_11, %c0_12] : memref<32x64xf32, #tpu.memory_space<vmem>>, vector<32x64xf32>
    %cst_13 = arith.constant dense<0.000000e+00> : vector<32x8xf32>
    %14 = tpu.matmul %13, %12, %cst_13 {dimension_numbers = #tpu.dot_dimension_numbers<[1], [0], [0], [1], [0, 0, 1, 1], [], []>} : vector<32x64xf32>, vector<64x8xf32>, vector<32x8xf32> -> vector<32x8xf32>
    %c0_14 = arith.constant 0 : index
    %c0_15 = arith.constant 0 : index
    %15 = vector.load %arg7[%c0_14, %c0_15] : memref<32x1xf32, #tpu.memory_space<vmem>>, vector<32x1xf32>
    %16 = vector.broadcast %15 : vector<32x1xf32> to vector<32x8xf32>
    %17 = arith.addf %14, %16 : vector<32x8xf32>
    %cst_16 = arith.constant 0.000000e+00 : f32
    %18 = vector.broadcast %cst_16 : f32 to vector<32x8xf32>
    %19 = arith.maximumf %17, %18 : vector<32x8xf32>
    %c0_17 = arith.constant 0 : index
    %c0_18 = arith.constant 0 : index
    %20 = vector.load %arg8[%c0_17, %c0_18] : memref<16x32xf32, #tpu.memory_space<vmem>>, vector<16x32xf32>
    %cst_19 = arith.constant dense<0.000000e+00> : vector<16x8xf32>
    %21 = tpu.matmul %20, %19, %cst_19 {dimension_numbers = #tpu.dot_dimension_numbers<[1], [0], [0], [1], [0, 0, 1, 1], [], []>} : vector<16x32xf32>, vector<32x8xf32>, vector<16x8xf32> -> vector<16x8xf32>
    %c0_20 = arith.constant 0 : index
    %c0_21 = arith.constant 0 : index
    %22 = vector.load %arg9[%c0_20, %c0_21] : memref<16x1xf32, #tpu.memory_space<vmem>>, vector<16x1xf32>
    %23 = vector.broadcast %22 : vector<16x1xf32> to vector<16x8xf32>
    %24 = arith.addf %21, %23 : vector<16x8xf32>
    %cst_22 = arith.constant 0.000000e+00 : f32
    %25 = vector.broadcast %cst_22 : f32 to vector<16x8xf32>
    %26 = arith.maximumf %24, %25 : vector<16x8xf32>
    %c0_23 = arith.constant 0 : index
    %c0_24 = arith.constant 0 : index
    %27 = vector.load %arg10[%c0_23, %c0_24] : memref<16x1xf32, #tpu.memory_space<vmem>>, vector<16x1xf32>
    %28 = vector.broadcast %27 : vector<16x1xf32> to vector<16x8xf32>
    %29 = arith.mulf %26, %28 : vector<16x8xf32>
    %cst_25 = arith.constant dense<0.000000e+00> : vector<8xf32>
    %30 = vector.multi_reduction <add>, %29, %cst_25 [0] : vector<16x8xf32> to vector<8xf32>
    %31 = vector.shape_cast %30 : vector<8xf32> to vector<1x8xf32>
    %c0_26 = arith.constant 0 : index
    %c0_27 = arith.constant 0 : index
    %32 = vector.load %arg11[%c0_26, %c0_27] : memref<1x1xf32, #tpu.memory_space<vmem>>, vector<1x1xf32>
    %33 = vector.broadcast %32 : vector<1x1xf32> to vector<1x8xf32>
    %34 = arith.addf %31, %33 : vector<1x8xf32>
    %c0_28 = arith.constant 0 : index
    %c0_29 = arith.constant 0 : index
    %35 = vector.load %arg12[%c0_28, %c0_29] : memref<1x8xf32, #tpu.memory_space<vmem>>, vector<1x8xf32>
    tpu.vector_store %arg12[%c0_28, %c0_29], %34 {strides = array<i32>} : memref<1x8xf32, #tpu.memory_space<vmem>>, vector<1x8xf32>,
    return
  }
  func.func @transform_0(%arg0: i32) -> (i32, i32) {
    %c0_i32 = arith.constant 0 : i32
    %c0_i32_0 = arith.constant 0 : i32
    return %c0_i32, %arg0 : i32, i32
  }
  func.func @transform_1(%arg0: i32) -> (i32, i32) {
    %c0_i32 = arith.constant 0 : i32
    %c0_i32_0 = arith.constant 0 : i32
    %c0_i32_1 = arith.constant 0 : i32
    return %c0_i32, %c0_i32_0 : i32, i32
  }
  func.func @transform_2(%arg0: i32) -> (i32, i32) {
    %c0_i32 = arith.constant 0 : i32
    %c0_i32_0 = arith.constant 0 : i32
    %c0_i32_1 = arith.constant 0 : i32
    return %c0_i32, %c0_i32_0 : i32, i32
  }
  func.func @transform_3(%arg0: i32) -> (i32, i32) {
    %c0_i32 = arith.constant 0 : i32
    %c0_i32_0 = arith.constant 0 : i32
    %c0_i32_1 = arith.constant 0 : i32
    return %c0_i32, %c0_i32_0 : i32, i32
  }
  func.func @transform_4(%arg0: i32) -> (i32, i32) {
    %c0_i32 = arith.constant 0 : i32
    %c0_i32_0 = arith.constant 0 : i32
    %c0_i32_1 = arith.constant 0 : i32
    return %c0_i32, %c0_i32_0 : i32, i32
  }
  func.func @transform_5(%arg0: i32) -> (i32, i32) {
    %c0_i32 = arith.constant 0 : i32
    %c0_i32_0 = arith.constant 0 : i32
    %c0_i32_1 = arith.constant 0 : i32
    return %c0_i32, %c0_i32_0 : i32, i32
  }
  func.func @transform_6(%arg0: i32) -> (i32, i32) {
    %c0_i32 = arith.constant 0 : i32
    %c0_i32_0 = arith.constant 0 : i32
    %c0_i32_1 = arith.constant 0 : i32
    return %c0_i32, %c0_i32_0 : i32, i32
  }
  func.func @transform_7(%arg0: i32) -> (i32, i32) {
    %c0_i32 = arith.constant 0 : i32
    %c0_i32_0 = arith.constant 0 : i32
    %c0_i32_1 = arith.constant 0 : i32
    return %c0_i32, %c0_i32_0 : i32, i32
  }
  func.func @transform_8(%arg0: i32) -> (i32, i32) {
    %c0_i32 = arith.constant 0 : i32
    %c0_i32_0 = arith.constant 0 : i32
    %c0_i32_1 = arith.constant 0 : i32
    return %c0_i32, %c0_i32_0 : i32, i32
  }
  func.func @transform_9(%arg0: i32) -> (i32, i32) {
    %c0_i32 = arith.constant 0 : i32
    %c0_i32_0 = arith.constant 0 : i32
    %c0_i32_1 = arith.constant 0 : i32
    return %c0_i32, %c0_i32_0 : i32, i32
  }
  func.func @transform_10(%arg0: i32) -> (i32, i32) {
    %c0_i32 = arith.constant 0 : i32
    %c0_i32_0 = arith.constant 0 : i32
    %c0_i32_1 = arith.constant 0 : i32
    return %c0_i32, %c0_i32_0 : i32, i32
  }
  func.func @transform_11(%arg0: i32) -> (i32, i32) {
    %c0_i32 = arith.constant 0 : i32
    %c0_i32_0 = arith.constant 0 : i32
    return %c0_i32, %arg0 : i32, i32
  }
}

</mosaic_0001>

<llo_original>
// kernel: graphrec_forward.1
$region0: #{graphrec_forward.1}
  #allocation0 [shape = 'u32[]', space=smem, size = 0x4, offset = 0x4, fixed_abs, tag = 'smem constant byte address 0x4 - core index']
  #allocation1 [shape = 'u32[144,128]{1,0:T(1,128)}', space=vmem, size = 0x12000, scoped, tag = 'internal scratch']
  #allocation2 [shape = 'f32[1,1]{1,0:T(1,128)S(1)}', space=vmem, size = 0x200, scoped, tag = 'scoped memory for graphrec_forward.1']
  %s0 = inlined_call_operand.vmem [shape: f32[64,8], index: 0, kind: input, shape index: {}]
  %s1 = inlined_call_operand.vmem [shape: f32[64,64], index: 1, kind: input, shape index: {}]
  %s2 = inlined_call_operand.vmem [shape: f32[64,1], index: 2, kind: input, shape index: {}]
  %s3 = inlined_call_operand.vmem [shape: f32[64,64], index: 3, kind: input, shape index: {}]
  %s4 = inlined_call_operand.vmem [shape: f32[64,1], index: 4, kind: input, shape index: {}]
  %s5 = inlined_call_operand.vmem [shape: f32[32,64], index: 5, kind: input, shape index: {}]
  %s6 = inlined_call_operand.vmem [shape: f32[32,1], index: 6, kind: input, shape index: {}]
  %s7 = inlined_call_operand.vmem [shape: f32[16,32], index: 7, kind: input, shape index: {}]
  %s8 = inlined_call_operand.vmem [shape: f32[16,1], index: 8, kind: input, shape index: {}]
  %s9 = inlined_call_operand.vmem [shape: f32[16,1], index: 9, kind: input, shape index: {}]
  %s10 = inlined_call_operand.<no memory space> [shape: f32[1,1], index: 10, kind: input, shape index: {}]
  %s11 = inlined_call_operand.hbm [shape: f32[1,8], index: 11, kind: output, shape index: {}]
  %s12 = sld [smem:[#allocation0]]
  $region54: #{graphrec_forward.1} parent=0
    _
  %s14 = ssub.s32 1, %s12
  %s15 = scalar_select 0, %s14, %s12
  %v16 = vstv %s10
  %17 = vst [vmem:[#allocation2] sm:$0x1] %v16
  $region1: #{graphrec_forward.1} parent=0
    #allocation3 [shape = 'u8[512]{0}', space=vmem, size = 0x400, scoped, tag = 'output window, operand 0, single buffered']
    #allocation4 [shape = 's32[1]{0}', space=sflag, size = 0x4, scoped, tag = 'scoped memory for graphrec_forward.1']
    %18 = vsyncpa [#allocation4], 0
    // Predicated region
    $region2: #{graphrec_forward.1} parent=1 // pred_check
      _
    $region3: #{graphrec_forward.1} parent=1 // pred_check_branch
      %20 = sbr.rel (0) target = $region5
    $region4: #{graphrec_forward.1} parent=1 // pred_region
      _
    $region5: #{graphrec_forward.1} parent=1 // pred_fallthru
      _
    // Predicated region
    $region6: #{graphrec_forward.1} parent=1 // pred_check
      _
    $region7: #{graphrec_forward.1} parent=1 // pred_check_branch
      %22 = sbr.rel (0) target = $region9
    $region8: #{graphrec_forward.1} parent=1 // pred_region
      _
    $region9: #{graphrec_forward.1} parent=1 // pred_fallthru
      _
    // Predicated region
    $region10: #{graphrec_forward.1} parent=1 // pred_check
      _
    $region11: #{graphrec_forward.1} parent=1 // pred_check_branch
      %24 = sbr.rel (0) target = $region13
    $region12: #{graphrec_forward.1} parent=1 // pred_region
      _
    $region13: #{graphrec_forward.1} parent=1 // pred_fallthru
      _
    // Predicated region
    $region14: #{graphrec_forward.1} parent=1 // pred_check
      _
    $region15: #{graphrec_forward.1} parent=1 // pred_check_branch
      %26 = sbr.rel (0) target = $region17
    $region16: #{graphrec_forward.1} parent=1 // pred_region
      _
    $region17: #{graphrec_forward.1} parent=1 // pred_fallthru
      _
    // Predicated region
    $region18: #{graphrec_forward.1} parent=1 // pred_check
      _
    $region19: #{graphrec_forward.1} parent=1 // pred_check_branch
      %28 = sbr.rel (0) target = $region21
    $region20: #{graphrec_forward.1} parent=1 // pred_region
      _
    $region21: #{graphrec_forward.1} parent=1 // pred_fallthru
      _
    // Predicated region
    $region22: #{graphrec_forward.1} parent=1 // pred_check
      _
    $region23: #{graphrec_forward.1} parent=1 // pred_check_branch
      %30 = sbr.rel (0) target = $region25
    $region24: #{graphrec_forward.1} parent=1 // pred_region
      _
    $region25: #{graphrec_forward.1} parent=1 // pred_fallthru
      _
    // Predicated region
    $region26: #{graphrec_forward.1} parent=1 // pred_check
      _
    $region27: #{graphrec_forward.1} parent=1 // pred_check_branch
      %32 = sbr.rel (0) target = $region29
    $region28: #{graphrec_forward.1} parent=1 // pred_region
      _
    $region29: #{graphrec_forward.1} parent=1 // pred_fallthru
      _
    // Predicated region
    $region30: #{graphrec_forward.1} parent=1 // pred_check
      _
    $region31: #{graphrec_forward.1} parent=1 // pred_check_branch
      %34 = sbr.rel (0) target = $region33
    $region32: #{graphrec_forward.1} parent=1 // pred_region
      _
    $region33: #{graphrec_forward.1} parent=1 // pred_fallthru
      _
    // Predicated region
    $region34: #{graphrec_forward.1} parent=1 // pred_check
      _
    $region35: #{graphrec_forward.1} parent=1 // pred_check_branch
      %36 = sbr.rel (0) target = $region37
    $region36: #{graphrec_forward.1} parent=1 // pred_region
      _
    $region37: #{graphrec_forward.1} parent=1 // pred_fallthru
      _
    // Predicated region
    $region38: #{graphrec_forward.1} parent=1 // pred_check
      _
    $region39: #{graphrec_forward.1} parent=1 // pred_check_branch
      %38 = sbr.rel (0) target = $region41
    $region40: #{graphrec_forward.1} parent=1 // pred_region
      _
    $region41: #{graphrec_forward.1} parent=1 // pred_fallthru
      _
    // Predicated region
    $region42: #{graphrec_forward.1} parent=1 // pred_check
      _
    $region43: #{graphrec_forward.1} parent=1 // pred_check_branch
      %40 = sbr.rel (0) target = $region45
    $region44: #{graphrec_forward.1} parent=1 // pred_region
      _
    $region45: #{graphrec_forward.1} parent=1 // pred_fallthru
      _
    %v41 = vld [vmem:[%s0] sm:$0xff]
    %v42 = vld [vmem:[%s0 + $0x8] sm:$0xff]
    %v43 = vld [vmem:[%s0 + $0x10] sm:$0xff]
    %v44 = vld [vmem:[%s0 + $0x18] sm:$0xff]
    %v45 = vld [vmem:[%s0 + $0x20] sm:$0xff]
    %v46 = vld [vmem:[%s0 + $0x28] sm:$0xff]
    %v47 = vld [vmem:[%s0 + $0x30] sm:$0xff]
    %v48 = vld [vmem:[%s0 + $0x38] sm:$0xff]
    %v49 = vld [vmem:[%s1] sm:$0xff]
    %v50 = vld [vmem:[%s1 + $0x8] sm:$0xff]
    %v51 = vld [vmem:[%s1 + $0x10] sm:$0xff]
    %v52 = vld [vmem:[%s1 + $0x18] sm:$0xff]
    %v53 = vld [vmem:[%s1 + $0x20] sm:$0xff]
    %v54 = vld [vmem:[%s1 + $0x28] sm:$0xff]
    %v55 = vld [vmem:[%s1 + $0x30] sm:$0xff]
    %v56 = vld [vmem:[%s1 + $0x38] sm:$0xff]
    %v57 = vld [vmem:[%s2] sm:$0xff]
    %v58 = vld [vmem:[%s2 + $0x8] sm:$0xff]
    %v59 = vld [vmem:[%s2 + $0x10] sm:$0xff]
    %v60 = vld [vmem:[%s2 + $0x18] sm:$0xff]
    %v61 = vld [vmem:[%s2 + $0x20] sm:$0xff]
    %v62 = vld [vmem:[%s2 + $0x28] sm:$0xff]
    %v63 = vld [vmem:[%s2 + $0x30] sm:$0xff]
    %v64 = vld [vmem:[%s2 + $0x38] sm:$0xff]
    %66 = vset.pattern.permute.xlu0 0
    %67 = vperm.xlu0 %66, %v57
    %v68 = vpop.permute.xlu0 %67
    %71 = vset.pattern.permute.xlu0 0
    %72 = vperm.xlu0 %71, %v58
    %v73 = vpop.permute.xlu0 %72
    %76 = vset.pattern.permute.xlu0 0
    %77 = vperm.xlu0 %76, %v59
    %v78 = vpop.permute.xlu0 %77
    %81 = vset.pattern.permute.xlu0 0
    %82 = vperm.xlu0 %81, %v60
    %v83 = vpop.permute.xlu0 %82
    %86 = vset.pattern.permute.xlu0 0
    %87 = vperm.xlu0 %86, %v61
    %v88 = vpop.permute.xlu0 %87
    %91 = vset.pattern.permute.xlu0 0
    %92 = vperm.xlu0 %91, %v62
    %v93 = vpop.permute.xlu0 %92
    %96 = vset.pattern.permute.xlu0 0
    %97 = vperm.xlu0 %96, %v63
    %v98 = vpop.permute.xlu0 %97
    %101 = vset.pattern.permute.xlu0 0
    %102 = vperm.xlu0 %101, %v64
    %v103 = vpop.permute.xlu0 %102
    %vm105 = vcmask 523264
    %v107 = vsel %vm105, %v49, 0
    %v110 = vsel %vm105, %v50, 0
    %v113 = vsel %vm105, %v51, 0
    %v116 = vsel %vm105, %v52, 0
    %v119 = vsel %vm105, %v53, 0
    %v122 = vsel %vm105, %v54, 0
    %v125 = vsel %vm105, %v55, 0
    %v128 = vsel %vm105, %v56, 0
    %130 = vmatprep.subr.mxu0 0.0
    %131 = vmatpush1.msra.mxu0 %v41
    %132 = vmatprep.subr.mxu0 0.0
    %133 = vmatpush1.msra.mxu0 %v42
    %134 = vmatprep.subr.mxu0 0.0
    %135 = vmatpush1.msra.mxu0 %v43
    %136 = vmatprep.subr.mxu0 0.0
    %137 = vmatpush1.msra.mxu0 %v44
    %138 = vmatprep.subr.mxu0 0.0
    %139 = vmatpush1.msra.mxu0 %v45
    %140 = vmatprep.subr.mxu0 0.0
    %141 = vmatpush1.msra.mxu0 %v46
    %142 = vmatprep.subr.mxu0 0.0
    %143 = vmatpush1.msra.mxu0 %v47
    %144 = vmatprep.subr.mxu0 0.0
    %145 = vmatpush1.msra.mxu0 %v48
    %146 = vmatprep.subr.mxu0 0.0
    %147 = vmatpush1.msra.mxu0 0.0
    %148 = vmatprep.subr.mxu0 0.0
    %149 = vmatpush1.msra.mxu0 0.0
    %150 = vmatprep.subr.mxu0 0.0
    %151 = vmatpush1.msra.mxu0 0.0
    %152 = vmatprep.subr.mxu0 0.0
    %153 = vmatpush1.msra.mxu0 0.0
    %154 = vmatprep.subr.mxu0 0.0
    %155 = vmatpush1.msra.mxu0 0.0
    %156 = vmatprep.subr.mxu0 0.0
    %157 = vmatpush1.msra.mxu0 0.0
    %158 = vmatprep.subr.mxu0 0.0
    %159 = vmatpush1.msra.mxu0 0.0
    %160 = vmatprep.subr.mxu0 0.0
    %161 = vmatpush1.msra.mxu0 0.0
    %162 = vmatprep.subr.mxu0 0.0
    %163 = vmatpush1.msra.mxu0 0.0
    %164 = vmatprep.subr.mxu0 0.0
    %165 = vmatpush1.msra.mxu0 0.0
    %166 = vmatprep.subr.mxu0 0.0
    %167 = vmatpush1.msra.mxu0 0.0
    %168 = vmatprep.subr.mxu0 0.0
    %169 = vmatpush1.msra.mxu0 0.0
    %170 = vmatprep.subr.mxu0 0.0
    %171 = vmatpush1.msra.mxu0 0.0
    %172 = vmatprep.subr.mxu0 0.0
    %173 = vmatpush1.msra.mxu0 0.0
    %174 = vmatprep.subr.mxu0 0.0
    %175 = vmatpush1.msra.mxu0 0.0
    %176 = vmatprep.subr.mxu0 0.0
    %177 = vmatpush1.msra.mxu0 0.0
    %178 = vmatprep.subr.mxu0 0.0
    %179 = vmatpush1.msra.mxu0 0.0
    %180 = vmatprep.subr.mxu0 0.0
    %181 = vmatpush1.msra.mxu0 0.0
    %182 = vmatprep.subr.mxu0 0.0
    %183 = vmatpush1.msra.mxu0 0.0
    %184 = vmatprep.subr.mxu0 0.0
    %185 = vmatpush1.msra.mxu0 0.0
    %186 = vmatprep.subr.mxu0 0.0
    %187 = vmatpush1.msra.mxu0 0.0
    %188 = vmatprep.subr.mxu0 0.0
    %189 = vmatpush1.msra.mxu0 0.0
    %190 = vmatprep.subr.mxu0 0.0
    %191 = vmatpush1.msra.mxu0 0.0
    %192 = vmatprep.subr.mxu0 0.0
    %193 = vmatpush1.msra.mxu0 0.0
    %194 = vmatprep.mubr.f32.mxu0 0.0
    %195 = vmatmul.mubr.f32.gmra.mrb[0].mxu0 %v107
    %v196 = vpop.f32.mrb[0].mxu0
    %v197 = vadd.f32 %v68, %v196
    %v198 = vpop.f32.mrb[0].mxu0
    %199 = vmatprep.mubr.f32.mxu0 0.0
    %200 = vmatmul.mubr.f32.gmra.mrb[0].mxu0 %v110
    %v201 = vpop.f32.mrb[0].mxu0
    %v202 = vadd.f32 %v73, %v201
    %v203 = vpop.f32.mrb[0].mxu0
    %204 = vmatprep.mubr.f32.mxu0 0.0
    %205 = vmatmul.mubr.f32.gmra.mrb[0].mxu0 %v113
    %v206 = vpop.f32.mrb[0].mxu0
    %v207 = vadd.f32 %v78, %v206
    %v208 = vpop.f32.mrb[0].mxu0
    %209 = vmatprep.mubr.f32.mxu0 0.0
    %210 = vmatmul.mubr.f32.gmra.mrb[0].mxu0 %v116
    %v211 = vpop.f32.mrb[0].mxu0
    %v212 = vadd.f32 %v83, %v211
    %v213 = vpop.f32.mrb[0].mxu0
    %214 = vmatprep.mubr.f32.mxu0 0.0
    %215 = vmatmul.mubr.f32.gmra.mrb[0].mxu0 %v119
    %v216 = vpop.f32.mrb[0].mxu0
    %v217 = vadd.f32 %v88, %v216
    %v218 = vpop.f32.mrb[0].mxu0
    %219 = vmatprep.mubr.f32.mxu0 0.0
    %220 = vmatmul.mubr.f32.gmra.mrb[0].mxu0 %v122
    %v221 = vpop.f32.mrb[0].mxu0
    %v222 = vadd.f32 %v93, %v221
    %v223 = vpop.f32.mrb[0].mxu0
    %224 = vmatprep.mubr.f32.mxu0 0.0
    %225 = vmatmul.mubr.f32.gmra.mrb[0].mxu0 %v125
    %v226 = vpop.f32.mrb[0].mxu0
    %v227 = vadd.f32 %v98, %v226
    %v228 = vpop.f32.mrb[0].mxu0
    %229 = vmatprep.mubr.f32.mxu0 0.0
    %230 = vmatmul.mubr.f32.gmra.mrb[0].mxu0 %v128
    %v231 = vpop.f32.mrb[0].mxu0
    %v232 = vadd.f32 %v103, %v231
    %v233 = vpop.f32.mrb[0].mxu0
    %234 = vdwg.mxu0
    %v235 = vmax.f32 %v197, 0.0
    %v236 = vmax.f32 %v202, 0.0
    %v237 = vmax.f32 %v207, 0.0
    %v238 = vmax.f32 %v212, 0.0
    %v239 = vmax.f32 %v217, 0.0
    %v240 = vmax.f32 %v222, 0.0
    %v241 = vmax.f32 %v227, 0.0
    %v242 = vmax.f32 %v232, 0.0
    %v243 = vld [vmem:[%s3] sm:$0xff]
    %v244 = vld [vmem:[%s3 + $0x8] sm:$0xff]
    %v245 = vld [vmem:[%s3 + $0x10] sm:$0xff]
    %v246 = vld [vmem:[%s3 + $0x18] sm:$0xff]
    %v247 = vld [vmem:[%s3 + $0x20] sm:$0xff]
    %v248 = vld [vmem:[%s3 + $0x28] sm:$0xff]
    %v249 = vld [vmem:[%s3 + $0x30] sm:$0xff]
    %v250 = vld [vmem:[%s3 + $0x38] sm:$0xff]
    %v251 = vld [vmem:[%s4] sm:$0xff]
    %v252 = vld [vmem:[%s4 + $0x8] sm:$0xff]
    %v253 = vld [vmem:[%s4 + $0x10] sm:$0xff]
    %v254 = vld [vmem:[%s4 + $0x18] sm:$0xff]
    %v255 = vld [vmem:[%s4 + $0x20] sm:$0xff]
    %v256 = vld [vmem:[%s4 + $0x28] sm:$0xff]
    %v257 = vld [vmem:[%s4 + $0x30] sm:$0xff]
    %v258 = vld [vmem:[%s4 + $0x38] sm:$0xff]
    %260 = vset.pattern.permute.xlu0 0
    %261 = vperm.xlu0 %260, %v251
    %v262 = vpop.permute.xlu0 %261
    %265 = vset.pattern.permute.xlu0 0
    %266 = vperm.xlu0 %265, %v252
    %v267 = vpop.permute.xlu0 %266
    %270 = vset.pattern.permute.xlu0 0
    %271 = vperm.xlu0 %270, %v253
    %v272 = vpop.permute.xlu0 %271
    %275 = vset.pattern.permute.xlu0 0
    %276 = vperm.xlu0 %275, %v254
    %v277 = vpop.permute.xlu0 %276
    %280 = vset.pattern.permute.xlu0 0
    %281 = vperm.xlu0 %280, %v255
    %v282 = vpop.permute.xlu0 %281
    %285 = vset.pattern.permute.xlu0 0
    %286 = vperm.xlu0 %285, %v256
    %v287 = vpop.permute.xlu0 %286
    %290 = vset.pattern.permute.xlu0 0
    %291 = vperm.xlu0 %290, %v257
    %v292 = vpop.permute.xlu0 %291
    %295 = vset.pattern.permute.xlu0 0
    %296 = vperm.xlu0 %295, %v258
    %v297 = vpop.permute.xlu0 %296
    %v300 = vsel %vm105, %v243, 0
    %v303 = vsel %vm105, %v244, 0
    %v306 = vsel %vm105, %v245, 0
    %v309 = vsel %vm105, %v246, 0
    %v312 = vsel %vm105, %v247, 0
    %v315 = vsel %vm105, %v248, 0
    %v318 = vsel %vm105, %v249, 0
    %v321 = vsel %vm105, %v250, 0
    %323 = vmatprep.subr.mxu0 0.0
    %324 = vmatpush1.msra.mxu0 %v235
    %325 = vmatprep.subr.mxu0 0.0
    %326 = vmatpush1.msra.mxu0 %v236
    %327 = vmatprep.subr.mxu0 0.0
    %328 = vmatpush1.msra.mxu0 %v237
    %329 = vmatprep.subr.mxu0 0.0
    %330 = vmatpush1.msra.mxu0 %v238
    %331 = vmatprep.subr.mxu0 0.0
    %332 = vmatpush1.msra.mxu0 %v239
    %333 = vmatprep.subr.mxu0 0.0
    %334 = vmatpush1.msra.mxu0 %v240
    %335 = vmatprep.subr.mxu0 0.0
    %336 = vmatpush1.msra.mxu0 %v241
    %337 = vmatprep.subr.mxu0 0.0
    %338 = vmatpush1.msra.mxu0 %v242
    %339 = vmatprep.subr.mxu0 0.0
    %340 = vmatpush1.msra.mxu0 0.0
    %341 = vmatprep.subr.mxu0 0.0
    %342 = vmatpush1.msra.mxu0 0.0
    %343 = vmatprep.subr.mxu0 0.0
    %344 = vmatpush1.msra.mxu0 0.0
    %345 = vmatprep.subr.mxu0 0.0
    %346 = vmatpush1.msra.mxu0 0.0
    %347 = vmatprep.subr.mxu0 0.0
    %348 = vmatpush1.msra.mxu0 0.0
    %349 = vmatprep.subr.mxu0 0.0
    %350 = vmatpush1.msra.mxu0 0.0
    %351 = vmatprep.subr.mxu0 0.0
    %352 = vmatpush1.msra.mxu0 0.0
    %353 = vmatprep.subr.mxu0 0.0
    %354 = vmatpush1.msra.mxu0 0.0
    %355 = vmatprep.subr.mxu0 0.0
    %356 = vmatpush1.msra.mxu0 0.0
    %357 = vmatprep.subr.mxu0 0.0
    %358 = vmatpush1.msra.mxu0 0.0
    %359 = vmatprep.subr.mxu0 0.0
    %360 = vmatpush1.msra.mxu0 0.0
    %361 = vmatprep.subr.mxu0 0.0
    %362 = vmatpush1.msra.mxu0 0.0
    %363 = vmatprep.subr.mxu0 0.0
    %364 = vmatpush1.msra.mxu0 0.0
    %365 = vmatprep.subr.mxu0 0.0
    %366 = vmatpush1.msra.mxu0 0.0
    %367 = vmatprep.subr.mxu0 0.0
    %368 = vmatpush1.msra.mxu0 0.0
    %369 = vmatprep.subr.mxu0 0.0
    %370 = vmatpush1.msra.mxu0 0.0
    %371 = vmatprep.subr.mxu0 0.0
    %372 = vmatpush1.msra.mxu0 0.0
    %373 = vmatprep.subr.mxu0 0.0
    %374 = vmatpush1.msra.mxu0 0.0
    %375 = vmatprep.subr.mxu0 0.0
    %376 = vmatpush1.msra.mxu0 0.0
    %377 = vmatprep.subr.mxu0 0.0
    %378 = vmatpush1.msra.mxu0 0.0
    %379 = vmatprep.subr.mxu0 0.0
    %380 = vmatpush1.msra.mxu0 0.0
    %381 = vmatprep.subr.mxu0 0.0
    %382 = vmatpush1.msra.mxu0 0.0
    %383 = vmatprep.subr.mxu0 0.0
    %384 = vmatpush1.msra.mxu0 0.0
    %385 = vmatprep.subr.mxu0 0.0
    %386 = vmatpush1.msra.mxu0 0.0
    %387 = vmatprep.mubr.f32.mxu0 0.0
    %388 = vmatmul.mubr.f32.gmra.mrb[0].mxu0 %v300
    %v389 = vpop.f32.mrb[0].mxu0
    %v390 = vadd.f32 %v262, %v389
    %v391 = vpop.f32.mrb[0].mxu0
    %392 = vmatprep.mubr.f32.mxu0 0.0
    %393 = vmatmul.mubr.f32.gmra.mrb[0].mxu0 %v303
    %v394 = vpop.f32.mrb[0].mxu0
    %v395 = vadd.f32 %v267, %v394
    %v396 = vpop.f32.mrb[0].mxu0
    %397 = vmatprep.mubr.f32.mxu0 0.0
    %398 = vmatmul.mubr.f32.gmra.mrb[0].mxu0 %v306
    %v399 = vpop.f32.mrb[0].mxu0
    %v400 = vadd.f32 %v272, %v399
    %v401 = vpop.f32.mrb[0].mxu0
    %402 = vmatprep.mubr.f32.mxu0 0.0
    %403 = vmatmul.mubr.f32.gmra.mrb[0].mxu0 %v309
    %v404 = vpop.f32.mrb[0].mxu0
    %v405 = vadd.f32 %v277, %v404
    %v406 = vpop.f32.mrb[0].mxu0
    %407 = vmatprep.mubr.f32.mxu0 0.0
    %408 = vmatmul.mubr.f32.gmra.mrb[0].mxu0 %v312
    %v409 = vpop.f32.mrb[0].mxu0
    %v410 = vadd.f32 %v282, %v409
    %v411 = vpop.f32.mrb[0].mxu0
    %412 = vmatprep.mubr.f32.mxu0 0.0
    %413 = vmatmul.mubr.f32.gmra.mrb[0].mxu0 %v315
    %v414 = vpop.f32.mrb[0].mxu0
    %v415 = vadd.f32 %v287, %v414
    %v416 = vpop.f32.mrb[0].mxu0
    %417 = vmatprep.mubr.f32.mxu0 0.0
    %418 = vmatmul.mubr.f32.gmra.mrb[0].mxu0 %v318
    %v419 = vpop.f32.mrb[0].mxu0
    %v420 = vadd.f32 %v292, %v419
    %v421 = vpop.f32.mrb[0].mxu0
    %422 = vmatprep.mubr.f32.mxu0 0.0
    %423 = vmatmul.mubr.f32.gmra.mrb[0].mxu0 %v321
    %v424 = vpop.f32.mrb[0].mxu0
    %v425 = vadd.f32 %v297, %v424
    %v426 = vpop.f32.mrb[0].mxu0
    %427 = vdwg.mxu0
    %v428 = vld [vmem:[%s5] sm:$0xff]
    %v429 = vld [vmem:[%s5 + $0x8] sm:$0xff]
    %v430 = vld [vmem:[%s5 + $0x10] sm:$0xff]
    %v431 = vld [vmem:[%s5 + $0x18] sm:$0xff]
    %v432 = vld [vmem:[%s6] sm:$0xff]
    %v433 = vld [vmem:[%s6 + $0x8] sm:$0xff]
    %v434 = vld [vmem:[%s6 + $0x10] sm:$0xff]
    %v435 = vld [vmem:[%s6 + $0x18] sm:$0xff]
    %437 = vset.pattern.permute.xlu0 0
    %438 = vperm.xlu0 %437, %v432
    %v439 = vpop.permute.xlu0 %438
    %442 = vset.pattern.permute.xlu0 0
    %443 = vperm.xlu0 %442, %v433
    %v444 = vpop.permute.xlu0 %443
    %447 = vset.pattern.permute.xlu0 0
    %448 = vperm.xlu0 %447, %v434
    %v449 = vpop.permute.xlu0 %448
    %452 = vset.pattern.permute.xlu0 0
    %453 = vperm.xlu0 %452, %v435
    %v454 = vpop.permute.xlu0 %453
    %v457 = vsel %vm105, %v428, 0
    %v460 = vsel %vm105, %v429, 0
    %v463 = vsel %vm105, %v430, 0
    %v466 = vsel %vm105, %v431, 0
    %468 = vmatprep.subr.mxu0 0.0
    %469 = vmatpush1.msra.mxu0 %v390
    %470 = vmatprep.subr.mxu0 0.0
    %471 = vmatpush1.msra.mxu0 %v395
    %472 = vmatprep.subr.mxu0 0.0
    %473 = vmatpush1.msra.mxu0 %v400
    %474 = vmatprep.subr.mxu0 0.0
    %475 = vmatpush1.msra.mxu0 %v405
    %476 = vmatprep.subr.mxu0 0.0
    %477 = vmatpush1.msra.mxu0 %v410
    %478 = vmatprep.subr.mxu0 0.0
    %479 = vmatpush1.msra.mxu0 %v415
    %480 = vmatprep.subr.mxu0 0.0
    %481 = vmatpush1.msra.mxu0 %v420
    %482 = vmatprep.subr.mxu0 0.0
    %483 = vmatpush1.msra.mxu0 %v425
    %484 = vmatprep.subr.mxu0 0.0
    %485 = vmatpush1.msra.mxu0 0.0
    %486 = vmatprep.subr.mxu0 0.0
    %487 = vmatpush1.msra.mxu0 0.0
    %488 = vmatprep.subr.mxu0 0.0
    %489 = vmatpush1.msra.mxu0 0.0
    %490 = vmatprep.subr.mxu0 0.0
    %491 = vmatpush1.msra.mxu0 0.0
    %492 = vmatprep.subr.mxu0 0.0
    %493 = vmatpush1.msra.mxu0 0.0
    %494 = vmatprep.subr.mxu0 0.0
    %495 = vmatpush1.msra.mxu0 0.0
    %496 = vmatprep.subr.mxu0 0.0
    %497 = vmatpush1.msra.mxu0 0.0
    %498 = vmatprep.subr.mxu0 0.0
    %499 = vmatpush1.msra.mxu0 0.0
    %500 = vmatprep.subr.mxu0 0.0
    %501 = vmatpush1.msra.mxu0 0.0
    %502 = vmatprep.subr.mxu0 0.0
    %503 = vmatpush1.msra.mxu0 0.0
    %504 = vmatprep.subr.mxu0 0.0
    %505 = vmatpush1.msra.mxu0 0.0
    %506 = vmatprep.subr.mxu0 0.0
    %507 = vmatpush1.msra.mxu0 0.0
    %508 = vmatprep.subr.mxu0 0.0
    %509 = vmatpush1.msra.mxu0 0.0
    %510 = vmatprep.subr.mxu0 0.0
    %511 = vmatpush1.msra.mxu0 0.0
    %512 = vmatprep.subr.mxu0 0.0
    %513 = vmatpush1.msra.mxu0 0.0
    %514 = vmatprep.subr.mxu0 0.0
    %515 = vmatpush1.msra.mxu0 0.0
    %516 = vmatprep.subr.mxu0 0.0
    %517 = vmatpush1.msra.mxu0 0.0
    %518 = vmatprep.subr.mxu0 0.0
    %519 = vmatpush1.msra.mxu0 0.0
    %520 = vmatprep.subr.mxu0 0.0
    %521 = vmatpush1.msra.mxu0 0.0
    %522 = vmatprep.subr.mxu0 0.0
    %523 = vmatpush1.msra.mxu0 0.0
    %524 = vmatprep.subr.mxu0 0.0
    %525 = vmatpush1.msra.mxu0 0.0
    %526 = vmatprep.subr.mxu0 0.0
    %527 = vmatpush1.msra.mxu0 0.0
    %528 = vmatprep.subr.mxu0 0.0
    %529 = vmatpush1.msra.mxu0 0.0
    %530 = vmatprep.subr.mxu0 0.0
    %531 = vmatpush1.msra.mxu0 0.0
    %532 = vmatprep.mubr.f32.mxu0 0.0
    %533 = vmatmul.mubr.f32.gmra.mrb[0].mxu0 %v457
    %v534 = vpop.f32.mrb[0].mxu0
    %v535 = vadd.f32 %v439, %v534
    %v536 = vpop.f32.mrb[0].mxu0
    %537 = vmatprep.mubr.f32.mxu0 0.0
    %538 = vmatmul.mubr.f32.gmra.mrb[0].mxu0 %v460
    %v539 = vpop.f32.mrb[0].mxu0
    %v540 = vadd.f32 %v444, %v539
    %v541 = vpop.f32.mrb[0].mxu0
    %542 = vmatprep.mubr.f32.mxu0 0.0
    %543 = vmatmul.mubr.f32.gmra.mrb[0].mxu0 %v463
    %v544 = vpop.f32.mrb[0].mxu0
    %v545 = vadd.f32 %v449, %v544
    %v546 = vpop.f32.mrb[0].mxu0
    %547 = vmatprep.mubr.f32.mxu0 0.0
    %548 = vmatmul.mubr.f32.gmra.mrb[0].mxu0 %v466
    %v549 = vpop.f32.mrb[0].mxu0
    %v550 = vadd.f32 %v454, %v549
    %v551 = vpop.f32.mrb[0].mxu0
    %552 = vdwg.mxu0
    %v553 = vmax.f32 %v535, 0.0
    %v554 = vmax.f32 %v540, 0.0
    %v555 = vmax.f32 %v545, 0.0
    %v556 = vmax.f32 %v550, 0.0
    %v557 = vld [vmem:[%s7] sm:$0xff]
    %v558 = vld [vmem:[%s7 + $0x8] sm:$0xff]
    %v559 = vld [vmem:[%s8] sm:$0xff]
    %v560 = vld [vmem:[%s8 + $0x8] sm:$0xff]
    %562 = vset.pattern.permute.xlu0 0
    %563 = vperm.xlu0 %562, %v559
    %v564 = vpop.permute.xlu0 %563
    %567 = vset.pattern.permute.xlu0 0
    %568 = vperm.xlu0 %567, %v560
    %v569 = vpop.permute.xlu0 %568
    %vm571 = vcmask 261120
    %v573 = vsel %vm571, %v557, 0
    %v576 = vsel %vm571, %v558, 0
    %578 = vmatprep.subr.mxu0 0.0
    %579 = vmatpush1.msra.mxu0 %v553
    %580 = vmatprep.subr.mxu0 0.0
    %581 = vmatpush1.msra.mxu0 %v554
    %582 = vmatprep.subr.mxu0 0.0
    %583 = vmatpush1.msra.mxu0 %v555
    %584 = vmatprep.subr.mxu0 0.0
    %585 = vmatpush1.msra.mxu0 %v556
    %586 = vmatprep.subr.mxu0 0.0
    %587 = vmatpush1.msra.mxu0 0.0
    %588 = vmatprep.subr.mxu0 0.0
    %589 = vmatpush1.msra.mxu0 0.0
    %590 = vmatprep.subr.mxu0 0.0
    %591 = vmatpush1.msra.mxu0 0.0
    %592 = vmatprep.subr.mxu0 0.0
    %593 = vmatpush1.msra.mxu0 0.0
    %594 = vmatprep.subr.mxu0 0.0
    %595 = vmatpush1.msra.mxu0 0.0
    %596 = vmatprep.subr.mxu0 0.0
    %597 = vmatpush1.msra.mxu0 0.0
    %598 = vmatprep.subr.mxu0 0.0
    %599 = vmatpush1.msra.mxu0 0.0
    %600 = vmatprep.subr.mxu0 0.0
    %601 = vmatpush1.msra.mxu0 0.0
    %602 = vmatprep.subr.mxu0 0.0
    %603 = vmatpush1.msra.mxu0 0.0
    %604 = vmatprep.subr.mxu0 0.0
    %605 = vmatpush1.msra.mxu0 0.0
    %606 = vmatprep.subr.mxu0 0.0
    %607 = vmatpush1.msra.mxu0 0.0
    %608 = vmatprep.subr.mxu0 0.0
    %609 = vmatpush1.msra.mxu0 0.0
    %610 = vmatprep.subr.mxu0 0.0
    %611 = vmatpush1.msra.mxu0 0.0
    %612 = vmatprep.subr.mxu0 0.0
    %613 = vmatpush1.msra.mxu0 0.0
    %614 = vmatprep.subr.mxu0 0.0
    %615 = vmatpush1.msra.mxu0 0.0
    %616 = vmatprep.subr.mxu0 0.0
    %617 = vmatpush1.msra.mxu0 0.0
    %618 = vmatprep.subr.mxu0 0.0
    %619 = vmatpush1.msra.mxu0 0.0
    %620 = vmatprep.subr.mxu0 0.0
    %621 = vmatpush1.msra.mxu0 0.0
    %622 = vmatprep.subr.mxu0 0.0
    %623 = vmatpush1.msra.mxu0 0.0
    %624 = vmatprep.subr.mxu0 0.0
    %625 = vmatpush1.msra.mxu0 0.0
    %626 = vmatprep.subr.mxu0 0.0
    %627 = vmatpush1.msra.mxu0 0.0
    %628 = vmatprep.subr.mxu0 0.0
    %629 = vmatpush1.msra.mxu0 0.0
    %630 = vmatprep.subr.mxu0 0.0
    %631 = vmatpush1.msra.mxu0 0.0
    %632 = vmatprep.subr.mxu0 0.0
    %633 = vmatpush1.msra.mxu0 0.0
    %634 = vmatprep.subr.mxu0 0.0
    %635 = vmatpush1.msra.mxu0 0.0
    %636 = vmatprep.subr.mxu0 0.0
    %637 = vmatpush1.msra.mxu0 0.0
    %638 = vmatprep.subr.mxu0 0.0
    %639 = vmatpush1.msra.mxu0 0.0
    %640 = vmatprep.subr.mxu0 0.0
    %641 = vmatpush1.msra.mxu0 0.0
    %642 = vmatprep.mubr.f32.mxu0 0.0
    %643 = vmatmul.mubr.f32.gmra.mrb[0].mxu0 %v573
    %v644 = vpop.f32.mrb[0].mxu0
    %v645 = vadd.f32 %v564, %v644
    %v646 = vpop.f32.mrb[0].mxu0
    %647 = vmatprep.mubr.f32.mxu0 0.0
    %648 = vmatmul.mubr.f32.gmra.mrb[0].mxu0 %v576
    %v649 = vpop.f32.mrb[0].mxu0
    %v650 = vadd.f32 %v569, %v649
    %v651 = vpop.f32.mrb[0].mxu0
    %652 = vdwg.mxu0
    %v653 = vmax.f32 %v645, 0.0
    %v654 = vmax.f32 %v650, 0.0
    %v655 = vld [vmem:[%s9] sm:$0xff]
    %v656 = vld [vmem:[%s9 + $0x8] sm:$0xff]
    %658 = vset.pattern.permute.xlu0 0
    %659 = vperm.xlu0 %658, %v655
    %v660 = vpop.permute.xlu0 %659
    %663 = vset.pattern.permute.xlu0 0
    %664 = vperm.xlu0 %663, %v656
    %v665 = vpop.permute.xlu0 %664
    %v667 = vmul.f32 %v653, %v660
    %v668 = vmul.f32 %v654, %v665
    %vm669 = vcmask 64512
    %v670 = vsel %vm669, %v667, 0.0
    %v671 = vsel %vm669, %v668, 0.0
    %v672 = vadd.f32 %v670, %v671
    %v673 = vrot.slane %v672, 4
    %v674 = vadd.f32 %v672, %v673
    %v675 = vrot.slane %v674, 2
    %v676 = vadd.f32 %v674, %v675
    %v677 = vrot.slane %v676, 1
    %v678 = vadd.f32 %v676, %v677
    %v679 = vld [vmem:[#allocation2] sm:$0x1]
    %681 = vset.pattern.permute.xlu0 0
    %682 = vperm.xlu0 %681, %v679
    %v683 = vpop.permute.xlu0 %682
    %v685 = vlaneseq
    %v686 = vshrl.u32 %v685, 7
    %v687 = vsub.s32 0, %v686
    %v688 = vrot.slane %v683, %v687
    %v689 = vadd.f32 %v678, %v688
    %vm690 = vcmask 57344
    %691 = vst.msk [vmem:[#allocation3] sm:$0x1] %vm690, %v689
    // Predicated region
    $region46: #{graphrec_forward.1} parent=1 // pred_check
      _
    $region47: #{graphrec_forward.1} parent=1 // pred_check_branch
      %693 = sbr.rel (0) target = $region49
    $region48: #{graphrec_forward.1} parent=1 // pred_region
      %s695 = ssub.s32 16, 16
      %696 = vsyncadd [#allocation4], %s695
      %s698 = sshll.u32 [#allocation3], 4
      %s699 = int_to_ptr.vmem [resolvable:$true] %s698
      %701 = dma.vmem_to_hbm [thread:$0]  %s699, 16, %s11, [#allocation4]
    $region49: #{graphrec_forward.1} parent=1 // pred_fallthru
      _
    // Predicated region
    $region50: #{graphrec_forward.1} parent=1 // pred_check
      _
    $region51: #{graphrec_forward.1} parent=1 // pred_check_branch
      %703 = sbr.rel (0) target = $region53
    $region52: #{graphrec_forward.1} parent=1 // pred_region
      %704 = dma.done [#allocation4], 16
    $region53: #{graphrec_forward.1} parent=1 // pred_fallthru
      _
    %705 = vsyncpa [#allocation4], 1

</llo_original>
